<compile_context>
chip_gen: v6e
topology: v6e:2x2x1
jax: 0.10.0
libtpu: 0.0.40
codegen_flags: <defaults>
</compile_context>

<pallas_src>
import jax
import jax.numpy as jnp
from jax.experimental import pallas as pl
from jax.experimental.pallas import tpu as pltpu


def _round_up(n, m):
    return ((n + m - 1) // m) * m


def policy_kernel(x_ref, p_ref, out_ref):
    """Fused MLP + softmax on one batch tile (transposed layout).

    x_ref:   (4, TB)   float32  -- x^T tile, batch on lanes
    p_ref:   (32, 16)  float32  -- packed params, resident across grid steps
    out_ref: (2, TB)   float32  -- softmax probabilities, transposed
    """
    xt = x_ref[...]                                    # (4, TB)

    # Static views into the packed parameter slab.
    w1t = p_ref[0:16, 0:4]                             # (16, 4)  = W1^T
    b1 = p_ref[0:16, 4:5]                              # (16, 1)
    w2t = p_ref[16:18, 0:16]                           # (2, 16)  = W2^T
    b2 = p_ref[24:26, 0:1]                             # (2, 1)

    # Layer 1 (4 -> 16) + ReLU: unrolled VPU FMAs over the 4 input features.
    ht = b1 + w1t[:, 0:1] * xt[0:1, :]
    for k in range(1, 4):
        ht = ht + w1t[:, k:k + 1] * xt[k:k + 1, :]
    ht = jnp.maximum(ht, 0.0)                          # (16, TB)

    # Layer 2 (16 -> 2): unrolled VPU FMAs over the 16 hidden features.
    st = b2 + w2t[:, 0:1] * ht[0:1, :]
    for j in range(1, 16):
        st = st + w2t[:, j:j + 1] * ht[j:j + 1, :]     # (2, TB)

    # Softmax over the 2 classes -- explicit elementwise math (VPU/EUP only).
    s0 = st[0:1, :]
    s1 = st[1:2, :]
    m = jnp.maximum(s0, s1)
    e0 = jnp.exp(s0 - m)
    e1 = jnp.exp(s1 - m)
    inv = 1.0 / (e0 + e1)                              # exact: keep 1e-5 tol
    out_ref[0:1, :] = e0 * inv
    out_ref[1:2, :] = e1 * inv


def pack_params(w1, b1, w2, b2):
    """Pack all Policy parameters into a single (32, 16) f32 slab (one DMA)."""
    p = jnp.zeros((32, 16), jnp.float32)
    p = p.at[0:16, 0:4].set(jnp.asarray(w1, jnp.float32).T)           # W1^T
    p = p.at[0:16, 4:5].set(jnp.asarray(b1, jnp.float32).reshape(16, 1))
    p = p.at[16:18, 0:16].set(jnp.asarray(w2, jnp.float32).T)         # W2^T
    p = p.at[24:26, 0:1].set(jnp.asarray(b2, jnp.float32).reshape(2, 1))
    return p


def policy_forward(x, w1, b1, w2, b2, *, batch_tile=512):
    """softmax(relu(x @ W1 + b1) @ W2 + b2), computed in a batch-tiled,
    lane-dense transposed layout."""
    B = x.shape[0]
    params = pack_params(w1, b1, w2, b2)

    # Batch on the lane axis, padded to a multiple of the tile (itself a
    # multiple of 128 so lane-dim blocking constraints hold).
    tb = min(batch_tile, _round_up(B, 128))
    b_pad = _round_up(B, tb)
    xt = jnp.zeros((4, b_pad), jnp.float32).at[:, :B].set(
        jnp.asarray(x, jnp.float32).T)

    out_t = pl.pallas_call(
        policy_kernel,
        out_shape=jax.ShapeDtypeStruct((2, b_pad), jnp.float32),
        grid_spec=pltpu.PrefetchScalarGridSpec(
            num_scalar_prefetch=0,
            grid=(b_pad // tb,),
            in_specs=[
                pl.BlockSpec((4, tb), lambda i: (0, i)),    # streamed x tile
                pl.BlockSpec((32, 16), lambda i: (0, 0)),   # resident params
            ],
            out_specs=pl.BlockSpec((2, tb), lambda i: (0, i)),
        ),
        compiler_params=pltpu.CompilerParams(
            dimension_semantics=("parallel",)),
    )(xt, params)

    return out_t[:, :B].T                                  # (B, 2)


def init_params(key):
    """Deterministic parameter init mimicking nn.Linear's uniform init."""
    k1, k2, k3, k4 = jax.random.split(key, 4)
    bound1 = 1.0 / jnp.sqrt(4.0)   # fan_in = 4
    bound2 = 1.0 / jnp.sqrt(16.0)  # fan_in = 16
    # stored as (in_features, out_features): forward computes x @ W
    w1 = jax.random.uniform(k1, (4, 16), jnp.float32, -bound1, bound1)
    b1 = jax.random.uniform(k2, (1, 16), jnp.float32, -bound1, bound1)
    w2 = jax.random.uniform(k3, (16, 2), jnp.float32, -bound2, bound2)
    b2 = jax.random.uniform(k4, (1, 2), jnp.float32, -bound2, bound2)
    return w1, b1, w2, b2


def policy_forward_ref(x, w1, b1, w2, b2):
    """Pure-JAX reference for correctness checking."""
    h = jnp.maximum(x @ w1 + b1, 0.0)
    s = h @ w2 + b2
    return jax.nn.softmax(s, axis=1)


if __name__ == "__main__":
    key = jax.random.PRNGKey(0)
    k_x, k_p, k_x2 = jax.random.split(key, 3)

    w1, b1, w2, b2 = init_params(k_p)

    # Small CartPole-style batch (obs dim 4).
    B = 8
    x = jax.random.normal(k_x, (B, 4), dtype=jnp.float32)
    out = jax.block_until_ready(policy_forward(x, w1, b1, w2, b2))
    ref = policy_forward_ref(x, w1, b1, w2, b2)
    assert out.shape == (B, 2)
    assert jnp.allclose(out, ref, atol=1e-5, rtol=1e-5), "mismatch vs reference"
    assert jnp.allclose(jnp.sum(out, axis=1), 1.0, atol=1e-5)

    # Larger, non-tile-aligned batch: exercises padding + multi-step grid with
    # the parameter slab resident across steps.
    B2 = 1000
    x2 = jax.random.normal(k_x2, (B2, 4), dtype=jnp.float32)
    out2 = jax.block_until_ready(policy_forward(x2, w1, b1, w2, b2))
    ref2 = policy_forward_ref(x2, w1, b1, w2, b2)
    assert out2.shape == (B2, 2)
    assert jnp.allclose(out2, ref2, atol=1e-5, rtol=1e-5), "mismatch (grid path)"
    assert jnp.allclose(jnp.sum(out2, axis=1), 1.0, atol=1e-5)

    print("KERNEL_OK")
</pallas_src>

<mosaic_0001>
module attributes {stable_mosaic.version = 11 : i64} {
  func.func @policy_kernel(%arg0: i32, %arg1: memref<4x128xf32, #tpu.memory_space<vmem>>, %arg2: memref<32x16xf32, #tpu.memory_space<vmem>>, %arg3: memref<2x128xf32, #tpu.memory_space<vmem>>) attributes {dimension_semantics = [#tpu.dimension_semantics<parallel>], iteration_bounds = array<i64: 1>, scalar_prefetch = 0 : i64, scratch_operands = 0 : i64, tpu.core_type = #tpu.core_type<tc>, window_params = [{transform_indices = @transform_0, window_bounds = array<i64: 4, 128>}, {pipeline_mode = #tpu.pipeline_mode<synchronous>, transform_indices = @transform_1, window_bounds = array<i64: 32, 16>}, {transform_indices = @transform_2, window_bounds = array<i64: 2, 128>}]} {
    %c0 = arith.constant 0 : index
    %c0_0 = arith.constant 0 : index
    %0 = vector.load %arg1[%c0, %c0_0] : memref<4x128xf32, #tpu.memory_space<vmem>>, vector<4x128xf32>
    %c0_1 = arith.constant 0 : index
    %c0_2 = arith.constant 0 : index
    %1 = vector.load %arg2[%c0_1, %c0_2] : memref<32x16xf32, #tpu.memory_space<vmem>>, vector<16x4xf32>
    %c0_3 = arith.constant 0 : index
    %c4 = arith.constant 4 : index
    %2 = vector.load %arg2[%c0_3, %c4] : memref<32x16xf32, #tpu.memory_space<vmem>>, vector<16x1xf32>
    %c16 = arith.constant 16 : index
    %c0_4 = arith.constant 0 : index
    %3 = vector.load %arg2[%c16, %c0_4] : memref<32x16xf32, #tpu.memory_space<vmem>>, vector<2x16xf32>
    %c24 = arith.constant 24 : index
    %c0_5 = arith.constant 0 : index
    %4 = vector.load %arg2[%c24, %c0_5] : memref<32x16xf32, #tpu.memory_space<vmem>>, vector<2x1xf32>
    %5 = vector.extract_strided_slice %1 {offsets = [0, 0], sizes = [16, 1], strides = [1, 1]} : vector<16x4xf32> to vector<16x1xf32>
    %6 = vector.extract_strided_slice %0 {offsets = [0, 0], sizes = [1, 128], strides = [1, 1]} : vector<4x128xf32> to vector<1x128xf32>
    %7 = vector.broadcast %5 : vector<16x1xf32> to vector<16x128xf32>
    %8 = vector.broadcast %6 : vector<1x128xf32> to vector<16x128xf32>
    %9 = arith.mulf %7, %8 : vector<16x128xf32>
    %10 = vector.broadcast %2 : vector<16x1xf32> to vector<16x128xf32>
    %11 = arith.addf %10, %9 : vector<16x128xf32>
    %12 = vector.extract_strided_slice %1 {offsets = [0, 1], sizes = [16, 1], strides = [1, 1]} : vector<16x4xf32> to vector<16x1xf32>
    %13 = vector.extract_strided_slice %0 {offsets = [1, 0], sizes = [1, 128], strides = [1, 1]} : vector<4x128xf32> to vector<1x128xf32>
    %14 = vector.broadcast %12 : vector<16x1xf32> to vector<16x128xf32>
    %15 = vector.broadcast %13 : vector<1x128xf32> to vector<16x128xf32>
    %16 = arith.mulf %14, %15 : vector<16x128xf32>
    %17 = arith.addf %11, %16 : vector<16x128xf32>
    %18 = vector.extract_strided_slice %1 {offsets = [0, 2], sizes = [16, 1], strides = [1, 1]} : vector<16x4xf32> to vector<16x1xf32>
    %19 = vector.extract_strided_slice %0 {offsets = [2, 0], sizes = [1, 128], strides = [1, 1]} : vector<4x128xf32> to vector<1x128xf32>
    %20 = vector.broadcast %18 : vector<16x1xf32> to vector<16x128xf32>
    %21 = vector.broadcast %19 : vector<1x128xf32> to vector<16x128xf32>
    %22 = arith.mulf %20, %21 : vector<16x128xf32>
    %23 = arith.addf %17, %22 : vector<16x128xf32>
    %24 = vector.extract_strided_slice %1 {offsets = [0, 3], sizes = [16, 1], strides = [1, 1]} : vector<16x4xf32> to vector<16x1xf32>
    %25 = vector.extract_strided_slice %0 {offsets = [3, 0], sizes = [1, 128], strides = [1, 1]} : vector<4x128xf32> to vector<1x128xf32>
    %26 = vector.broadcast %24 : vector<16x1xf32> to vector<16x128xf32>
    %27 = vector.broadcast %25 : vector<1x128xf32> to vector<16x128xf32>
    %28 = arith.mulf %26, %27 : vector<16x128xf32>
    %29 = arith.addf %23, %28 : vector<16x128xf32>
    %cst = arith.constant 0.000000e+00 : f32
    %30 = vector.broadcast %cst : f32 to vector<16x128xf32>
    %31 = arith.maximumf %29, %30 : vector<16x128xf32>
    %32 = vector.extract_strided_slice %3 {offsets = [0, 0], sizes = [2, 1], strides = [1, 1]} : vector<2x16xf32> to vector<2x1xf32>
    %33 = vector.extract_strided_slice %31 {offsets = [0, 0], sizes = [1, 128], strides = [1, 1]} : vector<16x128xf32> to vector<1x128xf32>
    %34 = vector.broadcast %32 : vector<2x1xf32> to vector<2x128xf32>
    %35 = vector.broadcast %33 : vector<1x128xf32> to vector<2x128xf32>
    %36 = arith.mulf %34, %35 : vector<2x128xf32>
    %37 = vector.broadcast %4 : vector<2x1xf32> to vector<2x128xf32>
    %38 = arith.addf %37, %36 : vector<2x128xf32>
    %39 = vector.extract_strided_slice %3 {offsets = [0, 1], sizes = [2, 1], strides = [1, 1]} : vector<2x16xf32> to vector<2x1xf32>
    %40 = vector.extract_strided_slice %31 {offsets = [1, 0], sizes = [1, 128], strides = [1, 1]} : vector<16x128xf32> to vector<1x128xf32>
    %41 = vector.broadcast %39 : vector<2x1xf32> to vector<2x128xf32>
    %42 = vector.broadcast %40 : vector<1x128xf32> to vector<2x128xf32>
    %43 = arith.mulf %41, %42 : vector<2x128xf32>
    %44 = arith.addf %38, %43 : vector<2x128xf32>
    %45 = vector.extract_strided_slice %3 {offsets = [0, 2], sizes = [2, 1], strides = [1, 1]} : vector<2x16xf32> to vector<2x1xf32>
    %46 = vector.extract_strided_slice %31 {offsets = [2, 0], sizes = [1, 128], strides = [1, 1]} : vector<16x128xf32> to vector<1x128xf32>
    %47 = vector.broadcast %45 : vector<2x1xf32> to vector<2x128xf32>
    %48 = vector.broadcast %46 : vector<1x128xf32> to vector<2x128xf32>
    %49 = arith.mulf %47, %48 : vector<2x128xf32>
    %50 = arith.addf %44, %49 : vector<2x128xf32>
    %51 = vector.extract_strided_slice %3 {offsets = [0, 3], sizes = [2, 1], strides = [1, 1]} : vector<2x16xf32> to vector<2x1xf32>
    %52 = vector.extract_strided_slice %31 {offsets = [3, 0], sizes = [1, 128], strides = [1, 1]} : vector<16x128xf32> to vector<1x128xf32>
    %53 = vector.broadcast %51 : vector<2x1xf32> to vector<2x128xf32>
    %54 = vector.broadcast %52 : vector<1x128xf32> to vector<2x128xf32>
    %55 = arith.mulf %53, %54 : vector<2x128xf32>
    %56 = arith.addf %50, %55 : vector<2x128xf32>
    %57 = vector.extract_strided_slice %3 {offsets = [0, 4], sizes = [2, 1], strides = [1, 1]} : vector<2x16xf32> to vector<2x1xf32>
    %58 = vector.extract_strided_slice %31 {offsets = [4, 0], sizes = [1, 128], strides = [1, 1]} : vector<16x128xf32> to vector<1x128xf32>
    %59 = vector.broadcast %57 : vector<2x1xf32> to vector<2x128xf32>
    %60 = vector.broadcast %58 : vector<1x128xf32> to vector<2x128xf32>
    %61 = arith.mulf %59, %60 : vector<2x128xf32>
    %62 = arith.addf %56, %61 : vector<2x128xf32>
    %63 = vector.extract_strided_slice %3 {offsets = [0, 5], sizes = [2, 1], strides = [1, 1]} : vector<2x16xf32> to vector<2x1xf32>
    %64 = vector.extract_strided_slice %31 {offsets = [5, 0], sizes = [1, 128], strides = [1, 1]} : vector<16x128xf32> to vector<1x128xf32>
    %65 = vector.broadcast %63 : vector<2x1xf32> to vector<2x128xf32>
    %66 = vector.broadcast %64 : vector<1x128xf32> to vector<2x128xf32>
    %67 = arith.mulf %65, %66 : vector<2x128xf32>
    %68 = arith.addf %62, %67 : vector<2x128xf32>
    %69 = vector.extract_strided_slice %3 {offsets = [0, 6], sizes = [2, 1], strides = [1, 1]} : vector<2x16xf32> to vector<2x1xf32>
    %70 = vector.extract_strided_slice %31 {offsets = [6, 0], sizes = [1, 128], strides = [1, 1]} : vector<16x128xf32> to vector<1x128xf32>
    %71 = vector.broadcast %69 : vector<2x1xf32> to vector<2x128xf32>
    %72 = vector.broadcast %70 : vector<1x128xf32> to vector<2x128xf32>
    %73 = arith.mulf %71, %72 : vector<2x128xf32>
    %74 = arith.addf %68, %73 : vector<2x128xf32>
    %75 = vector.extract_strided_slice %3 {offsets = [0, 7], sizes = [2, 1], strides = [1, 1]} : vector<2x16xf32> to vector<2x1xf32>
    %76 = vector.extract_strided_slice %31 {offsets = [7, 0], sizes = [1, 128], strides = [1, 1]} : vector<16x128xf32> to vector<1x128xf32>
    %77 = vector.broadcast %75 : vector<2x1xf32> to vector<2x128xf32>
    %78 = vector.broadcast %76 : vector<1x128xf32> to vector<2x128xf32>
    %79 = arith.mulf %77, %78 : vector<2x128xf32>
    %80 = arith.addf %74, %79 : vector<2x128xf32>
    %81 = vector.extract_strided_slice %3 {offsets = [0, 8], sizes = [2, 1], strides = [1, 1]} : vector<2x16xf32> to vector<2x1xf32>
    %82 = vector.extract_strided_slice %31 {offsets = [8, 0], sizes = [1, 128], strides = [1, 1]} : vector<16x128xf32> to vector<1x128xf32>
    %83 = vector.broadcast %81 : vector<2x1xf32> to vector<2x128xf32>
    %84 = vector.broadcast %82 : vector<1x128xf32> to vector<2x128xf32>
    %85 = arith.mulf %83, %84 : vector<2x128xf32>
    %86 = arith.addf %80, %85 : vector<2x128xf32>
    %87 = vector.extract_strided_slice %3 {offsets = [0, 9], sizes = [2, 1], strides = [1, 1]} : vector<2x16xf32> to vector<2x1xf32>
    %88 = vector.extract_strided_slice %31 {offsets = [9, 0], sizes = [1, 128], strides = [1, 1]} : vector<16x128xf32> to vector<1x128xf32>
    %89 = vector.broadcast %87 : vector<2x1xf32> to vector<2x128xf32>
    %90 = vector.broadcast %88 : vector<1x128xf32> to vector<2x128xf32>
    %91 = arith.mulf %89, %90 : vector<2x128xf32>
    %92 = arith.addf %86, %91 : vector<2x128xf32>
    %93 = vector.extract_strided_slice %3 {offsets = [0, 10], sizes = [2, 1], strides = [1, 1]} : vector<2x16xf32> to vector<2x1xf32>
    %94 = vector.extract_strided_slice %31 {offsets = [10, 0], sizes = [1, 128], strides = [1, 1]} : vector<16x128xf32> to vector<1x128xf32>
    %95 = vector.broadcast %93 : vector<2x1xf32> to vector<2x128xf32>
    %96 = vector.broadcast %94 : vector<1x128xf32> to vector<2x128xf32>
    %97 = arith.mulf %95, %96 : vector<2x128xf32>
    %98 = arith.addf %92, %97 : vector<2x128xf32>
    %99 = vector.extract_strided_slice %3 {offsets = [0, 11], sizes = [2, 1], strides = [1, 1]} : vector<2x16xf32> to vector<2x1xf32>
    %100 = vector.extract_strided_slice %31 {offsets = [11, 0], sizes = [1, 128], strides = [1, 1]} : vector<16x128xf32> to vector<1x128xf32>
    %101 = vector.broadcast %99 : vector<2x1xf32> to vector<2x128xf32>
    %102 = vector.broadcast %100 : vector<1x128xf32> to vector<2x128xf32>
    %103 = arith.mulf %101, %102 : vector<2x128xf32>
    %104 = arith.addf %98, %103 : vector<2x128xf32>
    %105 = vector.extract_strided_slice %3 {offsets = [0, 12], sizes = [2, 1], strides = [1, 1]} : vector<2x16xf32> to vector<2x1xf32>
    %106 = vector.extract_strided_slice %31 {offsets = [12, 0], sizes = [1, 128], strides = [1, 1]} : vector<16x128xf32> to vector<1x128xf32>
    %107 = vector.broadcast %105 : vector<2x1xf32> to vector<2x128xf32>
    %108 = vector.broadcast %106 : vector<1x128xf32> to vector<2x128xf32>
    %109 = arith.mulf %107, %108 : vector<2x128xf32>
    %110 = arith.addf %104, %109 : vector<2x128xf32>
    %111 = vector.extract_strided_slice %3 {offsets = [0, 13], sizes = [2, 1], strides = [1, 1]} : vector<2x16xf32> to vector<2x1xf32>
    %112 = vector.extract_strided_slice %31 {offsets = [13, 0], sizes = [1, 128], strides = [1, 1]} : vector<16x128xf32> to vector<1x128xf32>
    %113 = vector.broadcast %111 : vector<2x1xf32> to vector<2x128xf32>
    %114 = vector.broadcast %112 : vector<1x128xf32> to vector<2x128xf32>
    %115 = arith.mulf %113, %114 : vector<2x128xf32>
    %116 = arith.addf %110, %115 : vector<2x128xf32>
    %117 = vector.extract_strided_slice %3 {offsets = [0, 14], sizes = [2, 1], strides = [1, 1]} : vector<2x16xf32> to vector<2x1xf32>
    %118 = vector.extract_strided_slice %31 {offsets = [14, 0], sizes = [1, 128], strides = [1, 1]} : vector<16x128xf32> to vector<1x128xf32>
    %119 = vector.broadcast %117 : vector<2x1xf32> to vector<2x128xf32>
    %120 = vector.broadcast %118 : vector<1x128xf32> to vector<2x128xf32>
    %121 = arith.mulf %119, %120 : vector<2x128xf32>
    %122 = arith.addf %116, %121 : vector<2x128xf32>
    %123 = vector.extract_strided_slice %3 {offsets = [0, 15], sizes = [2, 1], strides = [1, 1]} : vector<2x16xf32> to vector<2x1xf32>
    %124 = vector.extract_strided_slice %31 {offsets = [15, 0], sizes = [1, 128], strides = [1, 1]} : vector<16x128xf32> to vector<1x128xf32>
    %125 = vector.broadcast %123 : vector<2x1xf32> to vector<2x128xf32>
    %126 = vector.broadcast %124 : vector<1x128xf32> to vector<2x128xf32>
    %127 = arith.mulf %125, %126 : vector<2x128xf32>
    %128 = arith.addf %122, %127 : vector<2x128xf32>
    %129 = vector.extract_strided_slice %128 {offsets = [0, 0], sizes = [1, 128], strides = [1, 1]} : vector<2x128xf32> to vector<1x128xf32>
    %130 = vector.extract_strided_slice %128 {offsets = [1, 0], sizes = [1, 128], strides = [1, 1]} : vector<2x128xf32> to vector<1x128xf32>
    %131 = arith.maximumf %129, %130 : vector<1x128xf32>
    %132 = arith.subf %129, %131 : vector<1x128xf32>
    %133 = math.exp %132 : vector<1x128xf32>
    %134 = arith.subf %130, %131 : vector<1x128xf32>
    %135 = math.exp %134 : vector<1x128xf32>
    %136 = arith.addf %133, %135 : vector<1x128xf32>
    %cst_6 = arith.constant 1.000000e+00 : f32
    %137 = vector.broadcast %cst_6 : f32 to vector<1x128xf32>
    %138 = arith.divf %137, %136 : vector<1x128xf32>
    %139 = arith.mulf %133, %138 : vector<1x128xf32>
    %c0_7 = arith.constant 0 : index
    %c0_8 = arith.constant 0 : index
    %140 = vector.load %arg3[%c0_7, %c0_8] : memref<2x128xf32, #tpu.memory_space<vmem>>, vector<1x128xf32>
    tpu.vector_store %arg3[%c0_7, %c0_8], %139 {strides = array<i32>} : memref<2x128xf32, #tpu.memory_space<vmem>>, vector<1x128xf32>,
    %141 = arith.mulf %135, %138 : vector<1x128xf32>
    %c1 = arith.constant 1 : index
    %c0_9 = arith.constant 0 : index
    %142 = vector.load %arg3[%c1, %c0_9] : memref<2x128xf32, #tpu.memory_space<vmem>>, vector<1x128xf32>
    tpu.vector_store %arg3[%c1, %c0_9], %141 {strides = array<i32>} : memref<2x128xf32, #tpu.memory_space<vmem>>, vector<1x128xf32>,
    return
  }
  func.func @transform_0(%arg0: i32) -> (i32, i32) {
    %c0_i32 = arith.constant 0 : i32
    %c0_i32_0 = arith.constant 0 : i32
    return %c0_i32, %arg0 : i32, i32
  }
  func.func @transform_1(%arg0: i32) -> (i32, i32) {
    %c0_i32 = arith.constant 0 : i32
    %c0_i32_0 = arith.constant 0 : i32
    %c0_i32_1 = arith.constant 0 : i32
    return %c0_i32, %c0_i32_0 : i32, i32
  }
  func.func @transform_2(%arg0: i32) -> (i32, i32) {
    %c0_i32 = arith.constant 0 : i32
    %c0_i32_0 = arith.constant 0 : i32
    return %c0_i32, %arg0 : i32, i32
  }
}

</mosaic_0001>

<llo_original>
// kernel: tpu_custom_call.1
$region0: #{tpu_custom_call.1}
  #allocation0 [shape = 'u32[]', space=smem, size = 0x4, offset = 0x4, fixed_abs, tag = 'smem constant byte address 0x4 - core index']
  #allocation1 [shape = 'u32[144,128]{1,0:T(1,128)}', space=vmem, size = 0x12000, scoped, tag = 'internal scratch']
  %s0 = inlined_call_operand.vmem [shape: f32[4,128], index: 0, kind: input, shape index: {}]
  %s1 = inlined_call_operand.vmem [shape: f32[32,16], index: 1, kind: input, shape index: {}]
  %s2 = inlined_call_operand.hbm [shape: f32[2,128], index: 2, kind: output, shape index: {}]
  %s3 = sld [smem:[#allocation0]]
  $region18: #{tpu_custom_call.1} parent=0
    _
  %s5 = ssub.s32 1, %s3
  %s6 = scalar_select 0, %s5, %s3
  $region1: #{tpu_custom_call.1} parent=0
    #allocation2 [shape = 'u8[1024]{0}', space=vmem, size = 0x400, scoped, tag = 'output window, operand 0, single buffered']
    #allocation3 [shape = 's32[1]{0}', space=sflag, size = 0x4, scoped, tag = 'scoped memory for tpu_custom_call.1']
    %7 = vsyncpa [#allocation3], 0
    // Predicated region
    $region2: #{tpu_custom_call.1} parent=1 // pred_check
      _
    $region3: #{tpu_custom_call.1} parent=1 // pred_check_branch
      %9 = sbr.rel (0) target = $region5
    $region4: #{tpu_custom_call.1} parent=1 // pred_region
      _
    $region5: #{tpu_custom_call.1} parent=1 // pred_fallthru
      _
    // Predicated region
    $region6: #{tpu_custom_call.1} parent=1 // pred_check
      _
    $region7: #{tpu_custom_call.1} parent=1 // pred_check_branch
      %11 = sbr.rel (0) target = $region9
    $region8: #{tpu_custom_call.1} parent=1 // pred_region
      _
    $region9: #{tpu_custom_call.1} parent=1 // pred_fallthru
      _
    %v12 = vld [vmem:[%s0] sm:$0xf]
    %v13 = vld [vmem:[%s1] sm:$0xff]
    %v14 = vld [vmem:[%s1 + $0x8] sm:$0xff]
    %v15 = vld [vmem:[%s1 + $0x10] sm:$0x3]
    %v16 = vld [vmem:[%s1 + $0x18] sm:$0x3]
    %18 = vset.pattern.permute.xlu0 0
    %19 = vperm.xlu0 %18, %v13
    %v20 = vpop.permute.xlu0 %19
    %23 = vset.pattern.permute.xlu0 0
    %24 = vperm.xlu0 %23, %v14
    %v25 = vpop.permute.xlu0 %24
    %v27 = vlaneseq
    %v28 = vshrl.u32 %v27, 7
    %v29 = vsub.s32 0, %v28
    %v30 = vrot.slane %v12, %v29
    %v31 = vmul.f32 %v20, %v30
    %v32 = vmul.f32 %v25, %v30
    %33 = vset.pattern.permute.xlu0 4
    %34 = vperm.xlu0 %33, %v13
    %v35 = vpop.permute.xlu0 %34
    %37 = vset.pattern.permute.xlu0 4
    %38 = vperm.xlu0 %37, %v14
    %v39 = vpop.permute.xlu0 %38
    %v41 = vadd.f32 %v35, %v31
    %v42 = vadd.f32 %v39, %v32
    %43 = vset.pattern.permute.xlu0 1
    %44 = vperm.xlu0 %43, %v13
    %v45 = vpop.permute.xlu0 %44
    %47 = vset.pattern.permute.xlu0 1
    %48 = vperm.xlu0 %47, %v14
    %v49 = vpop.permute.xlu0 %48
    %v51 = vlaneseq
    %v52 = vshrl.u32 %v51, 7
    %v53 = vsub.s32 1, %v52
    %v54 = vrot.slane %v12, %v53
    %v55 = vmul.f32 %v45, %v54
    %v56 = vmul.f32 %v49, %v54
    %v57 = vadd.f32 %v41, %v55
    %v58 = vadd.f32 %v42, %v56
    %59 = vset.pattern.permute.xlu0 2
    %60 = vperm.xlu0 %59, %v13
    %v61 = vpop.permute.xlu0 %60
    %63 = vset.pattern.permute.xlu0 2
    %64 = vperm.xlu0 %63, %v14
    %v65 = vpop.permute.xlu0 %64
    %v67 = vlaneseq
    %v68 = vshrl.u32 %v67, 7
    %v69 = vsub.s32 2, %v68
    %v70 = vrot.slane %v12, %v69
    %v71 = vmul.f32 %v61, %v70
    %v72 = vmul.f32 %v65, %v70
    %v73 = vadd.f32 %v57, %v71
    %v74 = vadd.f32 %v58, %v72
    %75 = vset.pattern.permute.xlu0 3
    %76 = vperm.xlu0 %75, %v13
    %v77 = vpop.permute.xlu0 %76
    %79 = vset.pattern.permute.xlu0 3
    %80 = vperm.xlu0 %79, %v14
    %v81 = vpop.permute.xlu0 %80
    %v83 = vlaneseq
    %v84 = vshrl.u32 %v83, 7
    %v85 = vsub.s32 3, %v84
    %v86 = vrot.slane %v12, %v85
    %v87 = vmul.f32 %v77, %v86
    %v88 = vmul.f32 %v81, %v86
    %v89 = vadd.f32 %v73, %v87
    %v90 = vadd.f32 %v74, %v88
    %v91 = vmax.f32 %v89, 0.0
    %v92 = vmax.f32 %v90, 0.0
    %94 = vset.pattern.permute.xlu0 0
    %95 = vperm.xlu0 %94, %v15
    %v96 = vpop.permute.xlu0 %95
    %v98 = vlaneseq
    %v99 = vshrl.u32 %v98, 7
    %v100 = vsub.s32 0, %v99
    %v101 = vrot.slane %v91, %v100
    %v102 = vmul.f32 %v96, %v101
    %104 = vset.pattern.permute.xlu0 0
    %105 = vperm.xlu0 %104, %v16
    %v106 = vpop.permute.xlu0 %105
    %v108 = vadd.f32 %v106, %v102
    %109 = vset.pattern.permute.xlu0 1
    %110 = vperm.xlu0 %109, %v15
    %v111 = vpop.permute.xlu0 %110
    %v113 = vlaneseq
    %v114 = vshrl.u32 %v113, 7
    %v115 = vsub.s32 1, %v114
    %v116 = vrot.slane %v91, %v115
    %v117 = vmul.f32 %v111, %v116
    %v118 = vadd.f32 %v108, %v117
    %119 = vset.pattern.permute.xlu0 2
    %120 = vperm.xlu0 %119, %v15
    %v121 = vpop.permute.xlu0 %120
    %v123 = vlaneseq
    %v124 = vshrl.u32 %v123, 7
    %v125 = vsub.s32 2, %v124
    %v126 = vrot.slane %v91, %v125
    %v127 = vmul.f32 %v121, %v126
    %v128 = vadd.f32 %v118, %v127
    %129 = vset.pattern.permute.xlu0 3
    %130 = vperm.xlu0 %129, %v15
    %v131 = vpop.permute.xlu0 %130
    %v133 = vlaneseq
    %v134 = vshrl.u32 %v133, 7
    %v135 = vsub.s32 3, %v134
    %v136 = vrot.slane %v91, %v135
    %v137 = vmul.f32 %v131, %v136
    %v138 = vadd.f32 %v128, %v137
    %139 = vset.pattern.permute.xlu0 4
    %140 = vperm.xlu0 %139, %v15
    %v141 = vpop.permute.xlu0 %140
    %v143 = vlaneseq
    %v144 = vshrl.u32 %v143, 7
    %v145 = vsub.s32 4, %v144
    %v146 = vrot.slane %v91, %v145
    %v147 = vmul.f32 %v141, %v146
    %v148 = vadd.f32 %v138, %v147
    %149 = vset.pattern.permute.xlu0 5
    %150 = vperm.xlu0 %149, %v15
    %v151 = vpop.permute.xlu0 %150
    %v153 = vlaneseq
    %v154 = vshrl.u32 %v153, 7
    %v155 = vsub.s32 5, %v154
    %v156 = vrot.slane %v91, %v155
    %v157 = vmul.f32 %v151, %v156
    %v158 = vadd.f32 %v148, %v157
    %159 = vset.pattern.permute.xlu0 6
    %160 = vperm.xlu0 %159, %v15
    %v161 = vpop.permute.xlu0 %160
    %v163 = vlaneseq
    %v164 = vshrl.u32 %v163, 7
    %v165 = vsub.s32 6, %v164
    %v166 = vrot.slane %v91, %v165
    %v167 = vmul.f32 %v161, %v166
    %v168 = vadd.f32 %v158, %v167
    %169 = vset.pattern.permute.xlu0 7
    %170 = vperm.xlu0 %169, %v15
    %v171 = vpop.permute.xlu0 %170
    %v173 = vlaneseq
    %v174 = vshrl.u32 %v173, 7
    %v175 = vsub.s32 7, %v174
    %v176 = vrot.slane %v91, %v175
    %v177 = vmul.f32 %v171, %v176
    %v178 = vadd.f32 %v168, %v177
    %179 = vset.pattern.permute.xlu0 8
    %180 = vperm.xlu0 %179, %v15
    %v181 = vpop.permute.xlu0 %180
    %v183 = vlaneseq
    %v184 = vshrl.u32 %v183, 7
    %v185 = vsub.s32 0, %v184
    %v186 = vrot.slane %v92, %v185
    %v187 = vmul.f32 %v181, %v186
    %v188 = vadd.f32 %v178, %v187
    %189 = vset.pattern.permute.xlu0 9
    %190 = vperm.xlu0 %189, %v15
    %v191 = vpop.permute.xlu0 %190
    %v193 = vlaneseq
    %v194 = vshrl.u32 %v193, 7
    %v195 = vsub.s32 1, %v194
    %v196 = vrot.slane %v92, %v195
    %v197 = vmul.f32 %v191, %v196
    %v198 = vadd.f32 %v188, %v197
    %199 = vset.pattern.permute.xlu0 10
    %200 = vperm.xlu0 %199, %v15
    %v201 = vpop.permute.xlu0 %200
    %v203 = vlaneseq
    %v204 = vshrl.u32 %v203, 7
    %v205 = vsub.s32 2, %v204
    %v206 = vrot.slane %v92, %v205
    %v207 = vmul.f32 %v201, %v206
    %v208 = vadd.f32 %v198, %v207
    %209 = vset.pattern.permute.xlu0 11
    %210 = vperm.xlu0 %209, %v15
    %v211 = vpop.permute.xlu0 %210
    %v213 = vlaneseq
    %v214 = vshrl.u32 %v213, 7
    %v215 = vsub.s32 3, %v214
    %v216 = vrot.slane %v92, %v215
    %v217 = vmul.f32 %v211, %v216
    %v218 = vadd.f32 %v208, %v217
    %219 = vset.pattern.permute.xlu0 12
    %220 = vperm.xlu0 %219, %v15
    %v221 = vpop.permute.xlu0 %220
    %v223 = vlaneseq
    %v224 = vshrl.u32 %v223, 7
    %v225 = vsub.s32 4, %v224
    %v226 = vrot.slane %v92, %v225
    %v227 = vmul.f32 %v221, %v226
    %v228 = vadd.f32 %v218, %v227
    %229 = vset.pattern.permute.xlu0 13
    %230 = vperm.xlu0 %229, %v15
    %v231 = vpop.permute.xlu0 %230
    %v233 = vlaneseq
    %v234 = vshrl.u32 %v233, 7
    %v235 = vsub.s32 5, %v234
    %v236 = vrot.slane %v92, %v235
    %v237 = vmul.f32 %v231, %v236
    %v238 = vadd.f32 %v228, %v237
    %239 = vset.pattern.permute.xlu0 14
    %240 = vperm.xlu0 %239, %v15
    %v241 = vpop.permute.xlu0 %240
    %v243 = vlaneseq
    %v244 = vshrl.u32 %v243, 7
    %v245 = vsub.s32 6, %v244
    %v246 = vrot.slane %v92, %v245
    %v247 = vmul.f32 %v241, %v246
    %v248 = vadd.f32 %v238, %v247
    %249 = vset.pattern.permute.xlu0 15
    %250 = vperm.xlu0 %249, %v15
    %v251 = vpop.permute.xlu0 %250
    %v253 = vlaneseq
    %v254 = vshrl.u32 %v253, 7
    %v255 = vsub.s32 7, %v254
    %v256 = vrot.slane %v92, %v255
    %v257 = vmul.f32 %v251, %v256
    %v258 = vadd.f32 %v248, %v257
    %v260 = vrot.slane %v258, 1
    %v262 = vmax.f32 %v258, %v260
    %v263 = vsub.f32 %v258, %v262
    %v264 = vmul.f32 %v263, 1.442695
    %v265 = vpow.pop %v264
    %v267 = vrot.slane %v262, 7
    %v269 = vsub.f32 %v258, %v267
    %v270 = vmul.f32 %v269, 1.442695
    %v271 = vpow.pop %v270
    %v273 = vrot.slane %v271, 1
    %v275 = vadd.f32 %v265, %v273
    %v276 = vrcp.pop %v275
    %v277 = vmul.f32 1.0, %v276
    %v278 = vmul.f32 %v265, %v277
    %279 = vst [vmem:[#allocation2] sm:$0x1] %v278
    %v281 = vrot.slane %v277, 7
    %v283 = vmul.f32 %v271, %v281
    %284 = vst [vmem:[#allocation2] sm:$0x2] %v283
    // Predicated region
    $region10: #{tpu_custom_call.1} parent=1 // pred_check
      _
    $region11: #{tpu_custom_call.1} parent=1 // pred_check_branch
      %286 = sbr.rel (0) target = $region13
    $region12: #{tpu_custom_call.1} parent=1 // pred_region
      %s288 = ssub.s32 32, 32
      %289 = vsyncadd [#allocation3], %s288
      %s291 = sshll.u32 [#allocation2], 4
      %s292 = int_to_ptr.vmem [resolvable:$true] %s291
      %294 = dma.vmem_to_hbm [thread:$0]  %s292, 32, %s2, [#allocation3]
    $region13: #{tpu_custom_call.1} parent=1 // pred_fallthru
      _
    // Predicated region
    $region14: #{tpu_custom_call.1} parent=1 // pred_check
      _
    $region15: #{tpu_custom_call.1} parent=1 // pred_check_branch
      %296 = sbr.rel (0) target = $region17
    $region16: #{tpu_custom_call.1} parent=1 // pred_region
      %297 = dma.done [#allocation3], 32
    $region17: #{tpu_custom_call.1} parent=1 // pred_fallthru
      _
    %298 = vsyncpa [#allocation3], 1

</llo_original>
